<compile_context>
chip_gen: v7x
topology: tpu7x:2x2x1
jax: 0.10.0
libtpu: 0.0.40
codegen_flags: <defaults>
</compile_context>

<pallas_src>
import math

import jax
import jax.numpy as jnp
from jax import lax
from jax.experimental import pallas as pl
from jax.experimental.pallas import tpu as pltpu

NEG_FILL = -9.0e15
BN_EPS = 1e-5
LEAKY_SLOPE = 0.01  # PyTorch nn.LeakyReLU default negative_slope


# ----------------------------------------------------------------------------- kernel
def _res_semgcn_kernel(x_ref, a1_ref, w1_ref, b1_ref, g1_ref, be1_ref,
                       a2_ref, w2_ref, b2_ref, g2_ref, be2_ref, o_ref):
    x = x_ref[...]                                   # [B, J, Fp] f32 (Fp lane-dense)
    B, J, Fp = x.shape
    inv_n = 1.0 / float(B * J)

    # Self-connection mask (built once per kernel invocation, reused by both layers).
    row = lax.broadcasted_iota(jnp.int32, (J, J), 0)
    col = lax.broadcasted_iota(jnp.int32, (J, J), 1)
    eye = (row == col).astype(jnp.float32)

    def gcn(inp, a_ref, w_ref, b_ref):
        # SemanticGraphConv: diag(A) * (x W0) + (A*(1-I)) @ (x W1) + b
        a = a_ref[...]                               # [J, J] masked logits
        m = jnp.max(a, axis=1, keepdims=True)
        e = jnp.exp(a - m)
        A = e / jnp.sum(e, axis=1, keepdims=True)    # row softmax (dim=1)
        A_eye = A * eye
        diag = jnp.sum(A_eye, axis=1, keepdims=True)  # [J, 1]  diag(A)
        A_off = A - A_eye                             # [J, J]  off-diagonal part

        # One fused weight matmul over the whole batch: [B*J, Fp] @ [Fp, 2Fp]
        w_cat = w_ref[...]                            # [Fp, 2Fp]
        xw = jnp.dot(inp.reshape(B * J, Fp), w_cat,
                     preferred_element_type=jnp.float32)
        xw = xw.reshape(B, J, 2 * Fp)
        xw0 = xw[:, :, :Fp]                           # x @ W0  (slice at vreg boundary)
        xw1 = xw[:, :, Fp:]                           # x @ W1

        # Diagonal adjacency term: pure VPU row-scale (no matmul).
        out = diag[None, :, :] * xw0                  # [B, J, Fp]
        # Off-diagonal term: one batched matmul over B.
        A_off_b = jnp.broadcast_to(A_off, (B, J, J))
        out = out + jnp.einsum('bjk,bkf->bjf', A_off_b, xw1,
                               preferred_element_type=jnp.float32)
        return out + b_ref[...][None]                 # bias [1, Fp]

    def batchnorm(y, g_ref, be_ref):
        # Training-mode BatchNorm1d: per-feature stats over (B, J), biased variance.
        # One-pass sum / sum-of-squares; rsqrt goes to the EUP slot.
        s = jnp.sum(y, axis=(0, 1), keepdims=True)
        ss = jnp.sum(y * y, axis=(0, 1), keepdims=True)
        mean = s * inv_n
        var = ss * inv_n - mean * mean
        yhat = (y - mean) * lax.rsqrt(var + BN_EPS)
        return yhat * g_ref[...][None] + be_ref[...][None]

    def leaky_relu(y):
        return jnp.where(y >= 0, y, LEAKY_SLOPE * y)

    identity = x
    out = gcn(x, a1_ref, w1_ref, b1_ref)
    out = batchnorm(out, g1_ref, be1_ref)
    out = leaky_relu(out)
    # dropout(p=0.0) -> identity
    out = gcn(out, a2_ref, w2_ref, b2_ref)
    out = batchnorm(out, g2_ref, be2_ref)
    o_ref[...] = leaky_relu(out + identity)


# ---------------------------------------------------------------------------- wrapper
@jax.jit
def res_semantic_gcn_block(x, a1, w1, b1, g1, be1, a2, w2, b2, g2, be2):
    B, J, F = x.shape
    Fp = ((F + 127) // 128) * 128                     # lane-dense feature dim

    def pad_last(t):
        cfg = [(0, 0)] * (t.ndim - 1) + [(0, Fp - F)]
        return jnp.pad(t, cfg)

    def pad_ff(w2d):                                  # [F, F] -> [Fp, Fp]
        return jnp.pad(w2d, ((0, Fp - F), (0, Fp - F)))

    # Fuse W0/W1 into a single [Fp, 2Fp] matrix per GCN layer (padded lane-dense).
    w_cat1 = jnp.concatenate([pad_ff(w1[0]), pad_ff(w1[1])], axis=1)
    w_cat2 = jnp.concatenate([pad_ff(w2[0]), pad_ff(w2[1])], axis=1)

    xp = pad_last(x)
    b1p, g1p, be1p = pad_last(b1), pad_last(g1), pad_last(be1)
    b2p, g2p, be2p = pad_last(b2), pad_last(g2), pad_last(be2)

    args = (xp, a1, w_cat1, b1p, g1p, be1p, a2, w_cat2, b2p, g2p, be2p)
    vmem_specs = [pl.BlockSpec(memory_space=pltpu.MemorySpace.VMEM) for _ in args]
    outp = pl.pallas_call(
        _res_semgcn_kernel,
        out_shape=jax.ShapeDtypeStruct((B, J, Fp), jnp.float32),
        in_specs=vmem_specs,
        out_specs=pl.BlockSpec(memory_space=pltpu.MemorySpace.VMEM),
    )(*args)
    return outp[:, :, :F]                             # drop lane padding


# ------------------------------------------------------------------ param / glue setup
def build_masked_logits(adj, sparse_w):
    """Place the flat learnable adj weights at the nonzero positions (row-major),
    fill everything else with -9e15 (same as the PyTorch forward)."""
    mask = (adj > 1e-8)
    flat = mask.reshape(-1)
    idx = jnp.cumsum(flat.astype(jnp.int32)) - 1
    idx = jnp.clip(idx, 0, sparse_w.shape[0] - 1)
    placed = jnp.where(flat, sparse_w[idx], NEG_FILL)
    return placed.reshape(adj.shape).astype(jnp.float32)


def init_gcn_params(key, features, adj):
    kw, kb = jax.random.split(key)
    # xavier_uniform(gain=1.414)-style bound (deterministic synthetic init)
    bound_w = 1.414 * math.sqrt(6.0 / (features + features))
    w = jax.random.uniform(kw, (2, features, features), jnp.float32, -bound_w, bound_w)
    stdv = 1.0 / math.sqrt(features)
    b = jax.random.uniform(kb, (1, features), jnp.float32, -stdv, stdv)
    nnz = int(jnp.sum(adj > 1e-8))
    sparse_w = jnp.ones((nnz,), jnp.float32)          # nn.init.constant_(adj_sparse_weight, 1)
    a_masked = build_masked_logits(adj, sparse_w)
    return a_masked, w, b


# --------------------------------------------------------------------- pure-JAX check
def reference_forward(x, a1, w1, b1, g1, be1, a2, w2, b2, g2, be2):
    J = x.shape[1]
    eye = jnp.eye(J, dtype=jnp.float32)

    def gcn(inp, a, w, b):
        A = jax.nn.softmax(a, axis=1)
        return (A * eye) @ (inp @ w[0]) + (A * (1.0 - eye)) @ (inp @ w[1]) + b[None]

    def bn(y, g, be):
        mean = jnp.mean(y, axis=(0, 1), keepdims=True)
        var = jnp.mean((y - mean) ** 2, axis=(0, 1), keepdims=True)
        return (y - mean) * lax.rsqrt(var + BN_EPS) * g[None] + be[None]

    def lrelu(y):
        return jnp.where(y >= 0, y, LEAKY_SLOPE * y)

    identity = x
    out = lrelu(bn(gcn(x, a1, w1, b1), g1, be1))
    out = bn(gcn(out, a2, w2, b2), g2, be2)
    return lrelu(out + identity)


# ------------------------------------------------------------------------------- main
if __name__ == "__main__":
    B, J, F = 2, 16, 32   # batch, joints (graph nodes), features

    key = jax.random.PRNGKey(0)
    k_x, k1, k2 = jax.random.split(key, 3)

    # Deterministic symmetric adjacency: chain skeleton + self-loops.
    chain = jnp.zeros((J, J), jnp.float32).at[jnp.arange(J - 1), jnp.arange(1, J)].set(1.0)
    adj = jnp.eye(J, dtype=jnp.float32) + chain + chain.T

    x = jax.random.normal(k_x, (B, J, F), jnp.float32)

    a1, w1, b1 = init_gcn_params(k1, F, adj)
    a2, w2, b2 = init_gcn_params(k2, F, adj)
    g1, be1 = jnp.ones((1, F), jnp.float32), jnp.zeros((1, F), jnp.float32)
    g2, be2 = jnp.ones((1, F), jnp.float32), jnp.zeros((1, F), jnp.float32)

    out = res_semantic_gcn_block(x, a1, w1, b1, g1, be1, a2, w2, b2, g2, be2)
    out = jax.block_until_ready(out)

    ref = reference_forward(x, a1, w1, b1, g1, be1, a2, w2, b2, g2, be2)
    assert out.shape == (B, J, F)
    assert jnp.allclose(out, ref, atol=1e-4, rtol=1e-4), "kernel/reference mismatch"

    print("KERNEL_OK")
</pallas_src>

<mosaic_0001>
module attributes {stable_mosaic.version = 11 : i64} {
  func.func @_res_semgcn_kernel(%arg0: memref<2x16x128xf32, #tpu.memory_space<vmem>>, %arg1: memref<16x16xf32, #tpu.memory_space<vmem>>, %arg2: memref<128x256xf32, #tpu.memory_space<vmem>>, %arg3: memref<1x128xf32, #tpu.memory_space<vmem>>, %arg4: memref<1x128xf32, #tpu.memory_space<vmem>>, %arg5: memref<1x128xf32, #tpu.memory_space<vmem>>, %arg6: memref<16x16xf32, #tpu.memory_space<vmem>>, %arg7: memref<128x256xf32, #tpu.memory_space<vmem>>, %arg8: memref<1x128xf32, #tpu.memory_space<vmem>>, %arg9: memref<1x128xf32, #tpu.memory_space<vmem>>, %arg10: memref<1x128xf32, #tpu.memory_space<vmem>>, %arg11: memref<2x16x128xf32, #tpu.memory_space<vmem>>) attributes {dimension_semantics = [], scalar_prefetch = 0 : i64, scratch_operands = 0 : i64, tpu.core_type = #tpu.core_type<tc>} {
    %c0 = arith.constant 0 : index
    %c0_0 = arith.constant 0 : index
    %c0_1 = arith.constant 0 : index
    %0 = vector.load %arg0[%c0, %c0_0, %c0_1] : memref<2x16x128xf32, #tpu.memory_space<vmem>>, vector<2x16x128xf32>
    %1 = tpu.iota {dimensions = array<i32: 0>} : vector<16x16xi32>
    %2 = tpu.iota {dimensions = array<i32: 1>} : vector<16x16xi32>
    %3 = arith.cmpi eq, %1, %2 : vector<16x16xi32>
    %4 = arith.extui %3 : vector<16x16xi1> to vector<16x16xi32>
    %5 = arith.sitofp %4 : vector<16x16xi32> to vector<16x16xf32>
    %c0_2 = arith.constant 0 : index
    %c0_3 = arith.constant 0 : index
    %6 = vector.load %arg1[%c0_2, %c0_3] : memref<16x16xf32, #tpu.memory_space<vmem>>, vector<16x16xf32>
    %cst = arith.constant dense<0xFF800000> : vector<16xf32>
    %7 = vector.multi_reduction <maximumf>, %6, %cst [1] : vector<16x16xf32> to vector<16xf32>
    %8 = vector.shape_cast %7 : vector<16xf32> to vector<16x1xf32>
    %9 = vector.broadcast %8 : vector<16x1xf32> to vector<16x16xf32>
    %10 = arith.subf %6, %9 : vector<16x16xf32>
    %11 = math.exp %10 : vector<16x16xf32>
    %cst_4 = arith.constant dense<0.000000e+00> : vector<16xf32>
    %12 = vector.multi_reduction <add>, %11, %cst_4 [1] : vector<16x16xf32> to vector<16xf32>
    %13 = vector.shape_cast %12 : vector<16xf32> to vector<16x1xf32>
    %14 = vector.broadcast %13 : vector<16x1xf32> to vector<16x16xf32>
    %15 = arith.divf %11, %14 : vector<16x16xf32>
    %16 = arith.mulf %15, %5 : vector<16x16xf32>
    %cst_5 = arith.constant dense<0.000000e+00> : vector<16xf32>
    %17 = vector.multi_reduction <add>, %16, %cst_5 [1] : vector<16x16xf32> to vector<16xf32>
    %18 = vector.shape_cast %17 : vector<16xf32> to vector<16x1xf32>
    %19 = arith.subf %15, %16 : vector<16x16xf32>
    %c0_6 = arith.constant 0 : index
    %c0_7 = arith.constant 0 : index
    %20 = vector.load %arg2[%c0_6, %c0_7] : memref<128x256xf32, #tpu.memory_space<vmem>>, vector<128x256xf32>
    %21 = vector.shape_cast %0 : vector<2x16x128xf32> to vector<32x128xf32>
    %cst_8 = arith.constant dense<0.000000e+00> : vector<32x256xf32>
    %22 = tpu.matmul %21, %20, %cst_8 {dimension_numbers = #tpu.dot_dimension_numbers<[1], [0], [0], [1], [0, 0, 1, 1], [], []>} : vector<32x128xf32>, vector<128x256xf32>, vector<32x256xf32> -> vector<32x256xf32>
    %23 = vector.shape_cast %22 : vector<32x256xf32> to vector<2x16x256xf32>
    %24 = vector.extract_strided_slice %23 {offsets = [0, 0, 0], sizes = [2, 16, 128], strides = [1, 1, 1]} : vector<2x16x256xf32> to vector<2x16x128xf32>
    %25 = vector.extract_strided_slice %23 {offsets = [0, 0, 128], sizes = [2, 16, 128], strides = [1, 1, 1]} : vector<2x16x256xf32> to vector<2x16x128xf32>
    %26 = vector.shape_cast %18 : vector<16x1xf32> to vector<1x16x1xf32>
    %27 = vector.broadcast %26 : vector<1x16x1xf32> to vector<2x16x128xf32>
    %28 = arith.mulf %27, %24 : vector<2x16x128xf32>
    %29 = vector.shape_cast %19 : vector<16x16xf32> to vector<1x16x16xf32>
    %30 = vector.broadcast %29 : vector<1x16x16xf32> to vector<2x16x16xf32>
    "tpu.trace_start"() <{level = 10 : i32, message = "bjk,bkf->bjf"}> : () -> ()
    %cst_9 = arith.constant dense<0.000000e+00> : vector<2x16x128xf32>
    %31 = tpu.matmul %30, %25, %cst_9 {dimension_numbers = #tpu.dot_dimension_numbers<[2], [1], [1], [2], [0, 0, 0, 1, 1, 2], [0], [0]>} : vector<2x16x16xf32>, vector<2x16x128xf32>, vector<2x16x128xf32> -> vector<2x16x128xf32>
    "tpu.trace_stop"() : () -> ()
    %32 = arith.addf %28, %31 : vector<2x16x128xf32>
    %c0_10 = arith.constant 0 : index
    %c0_11 = arith.constant 0 : index
    %33 = vector.load %arg3[%c0_10, %c0_11] : memref<1x128xf32, #tpu.memory_space<vmem>>, vector<1x128xf32>
    %34 = vector.shape_cast %33 : vector<1x128xf32> to vector<1x1x128xf32>
    %35 = vector.broadcast %34 : vector<1x1x128xf32> to vector<2x16x128xf32>
    %36 = arith.addf %32, %35 : vector<2x16x128xf32>
    %cst_12 = arith.constant dense<0.000000e+00> : vector<128xf32>
    %37 = vector.multi_reduction <add>, %36, %cst_12 [0, 1] : vector<2x16x128xf32> to vector<128xf32>
    %38 = vector.shape_cast %37 : vector<128xf32> to vector<1x1x128xf32>
    %39 = arith.mulf %36, %36 : vector<2x16x128xf32>
    %cst_13 = arith.constant dense<0.000000e+00> : vector<128xf32>
    %40 = vector.multi_reduction <add>, %39, %cst_13 [0, 1] : vector<2x16x128xf32> to vector<128xf32>
    %41 = vector.shape_cast %40 : vector<128xf32> to vector<1x1x128xf32>
    %cst_14 = arith.constant 3.125000e-02 : f32
    %42 = vector.broadcast %cst_14 : f32 to vector<1x1x128xf32>
    %43 = arith.mulf %38, %42 : vector<1x1x128xf32>
    %cst_15 = arith.constant 3.125000e-02 : f32
    %44 = vector.broadcast %cst_15 : f32 to vector<1x1x128xf32>
    %45 = arith.mulf %41, %44 : vector<1x1x128xf32>
    %46 = arith.mulf %43, %43 : vector<1x1x128xf32>
    %47 = arith.subf %45, %46 : vector<1x1x128xf32>
    %48 = vector.broadcast %43 : vector<1x1x128xf32> to vector<2x16x128xf32>
    %49 = arith.subf %36, %48 : vector<2x16x128xf32>
    %cst_16 = arith.constant 9.99999974E-6 : f32
    %50 = vector.broadcast %cst_16 : f32 to vector<1x1x128xf32>
    %51 = arith.addf %47, %50 : vector<1x1x128xf32>
    %52 = math.rsqrt %51 : vector<1x1x128xf32>
    %53 = vector.broadcast %52 : vector<1x1x128xf32> to vector<2x16x128xf32>
    %54 = arith.mulf %49, %53 : vector<2x16x128xf32>
    %c0_17 = arith.constant 0 : index
    %c0_18 = arith.constant 0 : index
    %55 = vector.load %arg4[%c0_17, %c0_18] : memref<1x128xf32, #tpu.memory_space<vmem>>, vector<1x128xf32>
    %56 = vector.shape_cast %55 : vector<1x128xf32> to vector<1x1x128xf32>
    %57 = vector.broadcast %56 : vector<1x1x128xf32> to vector<2x16x128xf32>
    %58 = arith.mulf %54, %57 : vector<2x16x128xf32>
    %c0_19 = arith.constant 0 : index
    %c0_20 = arith.constant 0 : index
    %59 = vector.load %arg5[%c0_19, %c0_20] : memref<1x128xf32, #tpu.memory_space<vmem>>, vector<1x128xf32>
    %60 = vector.shape_cast %59 : vector<1x128xf32> to vector<1x1x128xf32>
    %61 = vector.broadcast %60 : vector<1x1x128xf32> to vector<2x16x128xf32>
    %62 = arith.addf %58, %61 : vector<2x16x128xf32>
    %cst_21 = arith.constant 0.000000e+00 : f32
    %63 = vector.broadcast %cst_21 : f32 to vector<2x16x128xf32>
    %64 = arith.cmpf oge, %62, %63 : vector<2x16x128xf32>
    %cst_22 = arith.constant 0.00999999977 : f32
    %65 = vector.broadcast %cst_22 : f32 to vector<2x16x128xf32>
    %66 = arith.mulf %65, %62 : vector<2x16x128xf32>
    %67 = arith.select %64, %62, %66 : vector<2x16x128xi1>, vector<2x16x128xf32>
    %c0_23 = arith.constant 0 : index
    %c0_24 = arith.constant 0 : index
    %68 = vector.load %arg6[%c0_23, %c0_24] : memref<16x16xf32, #tpu.memory_space<vmem>>, vector<16x16xf32>
    %cst_25 = arith.constant dense<0xFF800000> : vector<16xf32>
    %69 = vector.multi_reduction <maximumf>, %68, %cst_25 [1] : vector<16x16xf32> to vector<16xf32>
    %70 = vector.shape_cast %69 : vector<16xf32> to vector<16x1xf32>
    %71 = vector.broadcast %70 : vector<16x1xf32> to vector<16x16xf32>
    %72 = arith.subf %68, %71 : vector<16x16xf32>
    %73 = math.exp %72 : vector<16x16xf32>
    %cst_26 = arith.constant dense<0.000000e+00> : vector<16xf32>
    %74 = vector.multi_reduction <add>, %73, %cst_26 [1] : vector<16x16xf32> to vector<16xf32>
    %75 = vector.shape_cast %74 : vector<16xf32> to vector<16x1xf32>
    %76 = vector.broadcast %75 : vector<16x1xf32> to vector<16x16xf32>
    %77 = arith.divf %73, %76 : vector<16x16xf32>
    %78 = arith.mulf %77, %5 : vector<16x16xf32>
    %cst_27 = arith.constant dense<0.000000e+00> : vector<16xf32>
    %79 = vector.multi_reduction <add>, %78, %cst_27 [1] : vector<16x16xf32> to vector<16xf32>
    %80 = vector.shape_cast %79 : vector<16xf32> to vector<16x1xf32>
    %81 = arith.subf %77, %78 : vector<16x16xf32>
    %c0_28 = arith.constant 0 : index
    %c0_29 = arith.constant 0 : index
    %82 = vector.load %arg7[%c0_28, %c0_29] : memref<128x256xf32, #tpu.memory_space<vmem>>, vector<128x256xf32>
    %83 = vector.shape_cast %67 : vector<2x16x128xf32> to vector<32x128xf32>
    %cst_30 = arith.constant dense<0.000000e+00> : vector<32x256xf32>
    %84 = tpu.matmul %83, %82, %cst_30 {dimension_numbers = #tpu.dot_dimension_numbers<[1], [0], [0], [1], [0, 0, 1, 1], [], []>} : vector<32x128xf32>, vector<128x256xf32>, vector<32x256xf32> -> vector<32x256xf32>
    %85 = vector.shape_cast %84 : vector<32x256xf32> to vector<2x16x256xf32>
    %86 = vector.extract_strided_slice %85 {offsets = [0, 0, 0], sizes = [2, 16, 128], strides = [1, 1, 1]} : vector<2x16x256xf32> to vector<2x16x128xf32>
    %87 = vector.extract_strided_slice %85 {offsets = [0, 0, 128], sizes = [2, 16, 128], strides = [1, 1, 1]} : vector<2x16x256xf32> to vector<2x16x128xf32>
    %88 = vector.shape_cast %80 : vector<16x1xf32> to vector<1x16x1xf32>
    %89 = vector.broadcast %88 : vector<1x16x1xf32> to vector<2x16x128xf32>
    %90 = arith.mulf %89, %86 : vector<2x16x128xf32>
    %91 = vector.shape_cast %81 : vector<16x16xf32> to vector<1x16x16xf32>
    %92 = vector.broadcast %91 : vector<1x16x16xf32> to vector<2x16x16xf32>
    "tpu.trace_start"() <{level = 10 : i32, message = "bjk,bkf->bjf"}> : () -> ()
    %cst_31 = arith.constant dense<0.000000e+00> : vector<2x16x128xf32>
    %93 = tpu.matmul %92, %87, %cst_31 {dimension_numbers = #tpu.dot_dimension_numbers<[2], [1], [1], [2], [0, 0, 0, 1, 1, 2], [0], [0]>} : vector<2x16x16xf32>, vector<2x16x128xf32>, vector<2x16x128xf32> -> vector<2x16x128xf32>
    "tpu.trace_stop"() : () -> ()
    %94 = arith.addf %90, %93 : vector<2x16x128xf32>
    %c0_32 = arith.constant 0 : index
    %c0_33 = arith.constant 0 : index
    %95 = vector.load %arg8[%c0_32, %c0_33] : memref<1x128xf32, #tpu.memory_space<vmem>>, vector<1x128xf32>
    %96 = vector.shape_cast %95 : vector<1x128xf32> to vector<1x1x128xf32>
    %97 = vector.broadcast %96 : vector<1x1x128xf32> to vector<2x16x128xf32>
    %98 = arith.addf %94, %97 : vector<2x16x128xf32>
    %cst_34 = arith.constant dense<0.000000e+00> : vector<128xf32>
    %99 = vector.multi_reduction <add>, %98, %cst_34 [0, 1] : vector<2x16x128xf32> to vector<128xf32>
    %100 = vector.shape_cast %99 : vector<128xf32> to vector<1x1x128xf32>
    %101 = arith.mulf %98, %98 : vector<2x16x128xf32>
    %cst_35 = arith.constant dense<0.000000e+00> : vector<128xf32>
    %102 = vector.multi_reduction <add>, %101, %cst_35 [0, 1] : vector<2x16x128xf32> to vector<128xf32>
    %103 = vector.shape_cast %102 : vector<128xf32> to vector<1x1x128xf32>
    %cst_36 = arith.constant 3.125000e-02 : f32
    %104 = vector.broadcast %cst_36 : f32 to vector<1x1x128xf32>
    %105 = arith.mulf %100, %104 : vector<1x1x128xf32>
    %cst_37 = arith.constant 3.125000e-02 : f32
    %106 = vector.broadcast %cst_37 : f32 to vector<1x1x128xf32>
    %107 = arith.mulf %103, %106 : vector<1x1x128xf32>
    %108 = arith.mulf %105, %105 : vector<1x1x128xf32>
    %109 = arith.subf %107, %108 : vector<1x1x128xf32>
    %110 = vector.broadcast %105 : vector<1x1x128xf32> to vector<2x16x128xf32>
    %111 = arith.subf %98, %110 : vector<2x16x128xf32>
    %cst_38 = arith.constant 9.99999974E-6 : f32
    %112 = vector.broadcast %cst_38 : f32 to vector<1x1x128xf32>
    %113 = arith.addf %109, %112 : vector<1x1x128xf32>
    %114 = math.rsqrt %113 : vector<1x1x128xf32>
    %115 = vector.broadcast %114 : vector<1x1x128xf32> to vector<2x16x128xf32>
    %116 = arith.mulf %111, %115 : vector<2x16x128xf32>
    %c0_39 = arith.constant 0 : index
    %c0_40 = arith.constant 0 : index
    %117 = vector.load %arg9[%c0_39, %c0_40] : memref<1x128xf32, #tpu.memory_space<vmem>>, vector<1x128xf32>
    %118 = vector.shape_cast %117 : vector<1x128xf32> to vector<1x1x128xf32>
    %119 = vector.broadcast %118 : vector<1x1x128xf32> to vector<2x16x128xf32>
    %120 = arith.mulf %116, %119 : vector<2x16x128xf32>
    %c0_41 = arith.constant 0 : index
    %c0_42 = arith.constant 0 : index
    %121 = vector.load %arg10[%c0_41, %c0_42] : memref<1x128xf32, #tpu.memory_space<vmem>>, vector<1x128xf32>
    %122 = vector.shape_cast %121 : vector<1x128xf32> to vector<1x1x128xf32>
    %123 = vector.broadcast %122 : vector<1x1x128xf32> to vector<2x16x128xf32>
    %124 = arith.addf %120, %123 : vector<2x16x128xf32>
    %125 = arith.addf %124, %0 : vector<2x16x128xf32>
    %cst_43 = arith.constant 0.000000e+00 : f32
    %126 = vector.broadcast %cst_43 : f32 to vector<2x16x128xf32>
    %127 = arith.cmpf oge, %125, %126 : vector<2x16x128xf32>
    %cst_44 = arith.constant 0.00999999977 : f32
    %128 = vector.broadcast %cst_44 : f32 to vector<2x16x128xf32>
    %129 = arith.mulf %128, %125 : vector<2x16x128xf32>
    %130 = arith.select %127, %125, %129 : vector<2x16x128xi1>, vector<2x16x128xf32>
    %c0_45 = arith.constant 0 : index
    %c0_46 = arith.constant 0 : index
    %c0_47 = arith.constant 0 : index
    %131 = vector.load %arg11[%c0_45, %c0_46, %c0_47] : memref<2x16x128xf32, #tpu.memory_space<vmem>>, vector<2x16x128xf32>
    tpu.vector_store %arg11[%c0_45, %c0_46, %c0_47], %130 {strides = array<i32>} : memref<2x16x128xf32, #tpu.memory_space<vmem>>, vector<2x16x128xf32>,
    return
  }
}

</mosaic_0001>

<llo_original>
// kernel: res_semantic_gcn_block.1
$region0: #{res_semantic_gcn_block.1}
  #allocation0 [shape = 'u32[]', space=smem, size = 0x4, offset = 0x4, fixed_abs, tag = 'smem constant byte address 0x4 - core index']
  #allocation1 [shape = 'u32[144,128]{1,0:T(1,128)}', space=vmem, size = 0x12000, scoped, tag = 'internal scratch']
  %s0 = inlined_call_operand.vmem [shape: f32[2,16,128], index: 0, kind: input, shape index: {}]
  %s1 = inlined_call_operand.vmem [shape: f32[16,16], index: 1, kind: input, shape index: {}]
  %s2 = inlined_call_operand.vmem [shape: f32[128,256], index: 2, kind: input, shape index: {}]
  %s3 = inlined_call_operand.vmem [shape: f32[1,128], index: 3, kind: input, shape index: {}]
  %s4 = inlined_call_operand.vmem [shape: f32[1,128], index: 4, kind: input, shape index: {}]
  %s5 = inlined_call_operand.vmem [shape: f32[1,128], index: 5, kind: input, shape index: {}]
  %s6 = inlined_call_operand.vmem [shape: f32[16,16], index: 6, kind: input, shape index: {}]
  %s7 = inlined_call_operand.vmem [shape: f32[128,256], index: 7, kind: input, shape index: {}]
  %s8 = inlined_call_operand.vmem [shape: f32[1,128], index: 8, kind: input, shape index: {}]
  %s9 = inlined_call_operand.vmem [shape: f32[1,128], index: 9, kind: input, shape index: {}]
  %s10 = inlined_call_operand.vmem [shape: f32[1,128], index: 10, kind: input, shape index: {}]
  %s11 = inlined_call_operand.hbm [shape: f32[2,16,128], index: 11, kind: output, shape index: {}]
  %s12 = sld [smem:[#allocation0]]
  $region54: #{res_semantic_gcn_block.1} parent=0
    _
  %s14 = ssub.s32 1, %s12
  %s15 = scalar_select 0, %s14, %s12
  $region1: #{res_semantic_gcn_block.1} parent=0
    #allocation2 [shape = 'u8[16384]{0}', space=vmem, size = 0x4000, scoped, tag = 'output window, operand 0, single buffered']
    #allocation3 [shape = 's32[1]{0}', space=sflag, size = 0x4, scoped, tag = 'scoped memory for res_semantic_gcn_block.1']
    %16 = vsyncpa [#allocation3], 0
    // Predicated region
    $region2: #{res_semantic_gcn_block.1} parent=1 // pred_check
      _
    $region3: #{res_semantic_gcn_block.1} parent=1 // pred_check_branch
      %18 = sbr.rel (0) target = $region5
    $region4: #{res_semantic_gcn_block.1} parent=1 // pred_region
      _
    $region5: #{res_semantic_gcn_block.1} parent=1 // pred_fallthru
      _
    // Predicated region
    $region6: #{res_semantic_gcn_block.1} parent=1 // pred_check
      _
    $region7: #{res_semantic_gcn_block.1} parent=1 // pred_check_branch
      %20 = sbr.rel (0) target = $region9
    $region8: #{res_semantic_gcn_block.1} parent=1 // pred_region
      _
    $region9: #{res_semantic_gcn_block.1} parent=1 // pred_fallthru
      _
    // Predicated region
    $region10: #{res_semantic_gcn_block.1} parent=1 // pred_check
      _
    $region11: #{res_semantic_gcn_block.1} parent=1 // pred_check_branch
      %22 = sbr.rel (0) target = $region13
    $region12: #{res_semantic_gcn_block.1} parent=1 // pred_region
      _
    $region13: #{res_semantic_gcn_block.1} parent=1 // pred_fallthru
      _
    // Predicated region
    $region14: #{res_semantic_gcn_block.1} parent=1 // pred_check
      _
    $region15: #{res_semantic_gcn_block.1} parent=1 // pred_check_branch
      %24 = sbr.rel (0) target = $region17
    $region16: #{res_semantic_gcn_block.1} parent=1 // pred_region
      _
    $region17: #{res_semantic_gcn_block.1} parent=1 // pred_fallthru
      _
    // Predicated region
    $region18: #{res_semantic_gcn_block.1} parent=1 // pred_check
      _
    $region19: #{res_semantic_gcn_block.1} parent=1 // pred_check_branch
      %26 = sbr.rel (0) target = $region21
    $region20: #{res_semantic_gcn_block.1} parent=1 // pred_region
      _
    $region21: #{res_semantic_gcn_block.1} parent=1 // pred_fallthru
      _
    // Predicated region
    $region22: #{res_semantic_gcn_block.1} parent=1 // pred_check
      _
    $region23: #{res_semantic_gcn_block.1} parent=1 // pred_check_branch
      %28 = sbr.rel (0) target = $region25
    $region24: #{res_semantic_gcn_block.1} parent=1 // pred_region
      _
    $region25: #{res_semantic_gcn_block.1} parent=1 // pred_fallthru
      _
    // Predicated region
    $region26: #{res_semantic_gcn_block.1} parent=1 // pred_check
      _
    $region27: #{res_semantic_gcn_block.1} parent=1 // pred_check_branch
      %30 = sbr.rel (0) target = $region29
    $region28: #{res_semantic_gcn_block.1} parent=1 // pred_region
      _
    $region29: #{res_semantic_gcn_block.1} parent=1 // pred_fallthru
      _
    // Predicated region
    $region30: #{res_semantic_gcn_block.1} parent=1 // pred_check
      _
    $region31: #{res_semantic_gcn_block.1} parent=1 // pred_check_branch
      %32 = sbr.rel (0) target = $region33
    $region32: #{res_semantic_gcn_block.1} parent=1 // pred_region
      _
    $region33: #{res_semantic_gcn_block.1} parent=1 // pred_fallthru
      _
    // Predicated region
    $region34: #{res_semantic_gcn_block.1} parent=1 // pred_check
      _
    $region35: #{res_semantic_gcn_block.1} parent=1 // pred_check_branch
      %34 = sbr.rel (0) target = $region37
    $region36: #{res_semantic_gcn_block.1} parent=1 // pred_region
      _
    $region37: #{res_semantic_gcn_block.1} parent=1 // pred_fallthru
      _
    // Predicated region
    $region38: #{res_semantic_gcn_block.1} parent=1 // pred_check
      _
    $region39: #{res_semantic_gcn_block.1} parent=1 // pred_check_branch
      %36 = sbr.rel (0) target = $region41
    $region40: #{res_semantic_gcn_block.1} parent=1 // pred_region
      _
    $region41: #{res_semantic_gcn_block.1} parent=1 // pred_fallthru
      _
    // Predicated region
    $region42: #{res_semantic_gcn_block.1} parent=1 // pred_check
      _
    $region43: #{res_semantic_gcn_block.1} parent=1 // pred_check_branch
      %38 = sbr.rel (0) target = $region45
    $region44: #{res_semantic_gcn_block.1} parent=1 // pred_region
      _
    $region45: #{res_semantic_gcn_block.1} parent=1 // pred_fallthru
      _
    %v39 = vld [vmem:[%s0] sm:$0xff]
    %v40 = vld [vmem:[%s0 + $0x8] sm:$0xff]
    %v41 = vld [vmem:[%s0 + $0x10] sm:$0xff]
    %v42 = vld [vmem:[%s0 + $0x18] sm:$0xff]
    %v43 = vlaneseq
    %v44 = vshrl.u32 %v43, 7
    %v45 = vadd.s32 %v44, 8
    %v46 = vlaneseq
    %v47 = vand.u32 %v46, 127
    %vm48 = vcmp.eq.s32.totalorder %v44, %v47
    %vm49 = vcmp.eq.s32.totalorder %v45, %v47
    %v50 = vsel %vm48, 1, 0
    %v51 = vsel %vm49, 1, 0
    %v52 = vcvt.s32.f32 %v50
    %v53 = vcvt.s32.f32 %v51
    %v54 = vld [vmem:[%s1] sm:$0xff]
    %v55 = vld [vmem:[%s1 + $0x8] sm:$0xff]
    %vm56 = vcmask 130048
    %v57 = vsel %vm56, %v54, -inf
    %58 = vmax.xlane.f32.xlu0 %v57
    %v59 = vpop.xlane.xlu0 %58
    %v60 = vsel %vm56, %v55, -inf
    %61 = vmax.xlane.f32.xlu0 %v60
    %v62 = vpop.xlane.xlu0 %61
    %v63 = vsub.f32 %v54, %v59
    %v64 = vsub.f32 %v55, %v62
    %v65 = vmul.f32 %v63, 1.442695
    %v66 = vpow.pop %v65
    %v67 = vmul.f32 %v64, 1.442695
    %v68 = vpow.pop %v67
    %v69 = vsel %vm56, %v66, 0.0
    %70 = vadd.xlane.f32.xlu0 %v69
    %v71 = vpop.xlane.xlu0 %70
    %v72 = vsel %vm56, %v68, 0.0
    %73 = vadd.xlane.f32.xlu0 %v72
    %v74 = vpop.xlane.xlu0 %73
    %v75 = vrcp.pop %v71
    %v76 = vmul.f32 %v66, %v75
    %v77 = vrcp.pop %v74
    %v78 = vmul.f32 %v68, %v77
    %v79 = vmul.f32 %v76, %v52
    %v80 = vmul.f32 %v78, %v53
    %v81 = vsel %vm56, %v79, 0.0
    %82 = vadd.xlane.f32.xlu0 %v81
    %v83 = vpop.xlane.xlu0 %82
    %v84 = vsel %vm56, %v80, 0.0
    %85 = vadd.xlane.f32.xlu0 %v84
    %v86 = vpop.xlane.xlu0 %85
    %v87 = vsub.f32 %v76, %v79
    %v88 = vsub.f32 %v78, %v80
    %v89 = vld [vmem:[%s2] sm:$0xff]
    %v90 = vld [vmem:[%s2 + $0x8] sm:$0xff]
    %v91 = vld [vmem:[%s2 + $0x10] sm:$0xff]
    %v92 = vld [vmem:[%s2 + $0x18] sm:$0xff]
    %v93 = vld [vmem:[%s2 + $0x20] sm:$0xff]
    %v94 = vld [vmem:[%s2 + $0x28] sm:$0xff]
    %v95 = vld [vmem:[%s2 + $0x30] sm:$0xff]
    %v96 = vld [vmem:[%s2 + $0x38] sm:$0xff]
    %v97 = vld [vmem:[%s2 + $0x40] sm:$0xff]
    %v98 = vld [vmem:[%s2 + $0x48] sm:$0xff]
    %v99 = vld [vmem:[%s2 + $0x50] sm:$0xff]
    %v100 = vld [vmem:[%s2 + $0x58] sm:$0xff]
    %v101 = vld [vmem:[%s2 + $0x60] sm:$0xff]
    %v102 = vld [vmem:[%s2 + $0x68] sm:$0xff]
    %v103 = vld [vmem:[%s2 + $0x70] sm:$0xff]
    %v104 = vld [vmem:[%s2 + $0x78] sm:$0xff]
    %v105 = vld [vmem:[%s2 + $0x80] sm:$0xff]
    %v106 = vld [vmem:[%s2 + $0x88] sm:$0xff]
    %v107 = vld [vmem:[%s2 + $0x90] sm:$0xff]
    %v108 = vld [vmem:[%s2 + $0x98] sm:$0xff]
    %v109 = vld [vmem:[%s2 + $0xa0] sm:$0xff]
    %v110 = vld [vmem:[%s2 + $0xa8] sm:$0xff]
    %v111 = vld [vmem:[%s2 + $0xb0] sm:$0xff]
    %v112 = vld [vmem:[%s2 + $0xb8] sm:$0xff]
    %v113 = vld [vmem:[%s2 + $0xc0] sm:$0xff]
    %v114 = vld [vmem:[%s2 + $0xc8] sm:$0xff]
    %v115 = vld [vmem:[%s2 + $0xd0] sm:$0xff]
    %v116 = vld [vmem:[%s2 + $0xd8] sm:$0xff]
    %v117 = vld [vmem:[%s2 + $0xe0] sm:$0xff]
    %v118 = vld [vmem:[%s2 + $0xe8] sm:$0xff]
    %v119 = vld [vmem:[%s2 + $0xf0] sm:$0xff]
    %v120 = vld [vmem:[%s2 + $0xf8] sm:$0xff]
    %121 = vmatprep.subr.mxu0 %v90
    %122 = vmatpush1.msra.mxu0 %v89
    %123 = vmatprep.subr.mxu0 %v92
    %124 = vmatpush1.msra.mxu0 %v91
    %125 = vmatprep.subr.mxu0 %v94
    %126 = vmatpush1.msra.mxu0 %v93
    %127 = vmatprep.subr.mxu0 %v96
    %128 = vmatpush1.msra.mxu0 %v95
    %129 = vmatprep.subr.mxu0 %v98
    %130 = vmatpush1.msra.mxu0 %v97
    %131 = vmatprep.subr.mxu0 %v100
    %132 = vmatpush1.msra.mxu0 %v99
    %133 = vmatprep.subr.mxu0 %v102
    %134 = vmatpush1.msra.mxu0 %v101
    %135 = vmatprep.subr.mxu0 %v104
    %136 = vmatpush1.msra.mxu0 %v103
    %137 = vmatprep.subr.mxu0 %v106
    %138 = vmatpush1.msra.mxu0 %v105
    %139 = vmatprep.subr.mxu0 %v108
    %140 = vmatpush1.msra.mxu0 %v107
    %141 = vmatprep.subr.mxu0 %v110
    %142 = vmatpush1.msra.mxu0 %v109
    %143 = vmatprep.subr.mxu0 %v112
    %144 = vmatpush1.msra.mxu0 %v111
    %145 = vmatprep.subr.mxu0 %v114
    %146 = vmatpush1.msra.mxu0 %v113
    %147 = vmatprep.subr.mxu0 %v116
    %148 = vmatpush1.msra.mxu0 %v115
    %149 = vmatprep.subr.mxu0 %v118
    %150 = vmatpush1.msra.mxu0 %v117
    %151 = vmatprep.subr.mxu0 %v120
    %152 = vmatpush1.msra.mxu0 %v119
    %153 = vmatprep.subr.mxu0 0.0
    %154 = vmatpush1.msra.mxu0 0.0
    %155 = vmatprep.subr.mxu0 0.0
    %156 = vmatpush1.msra.mxu0 0.0
    %157 = vmatprep.subr.mxu0 0.0
    %158 = vmatpush1.msra.mxu0 0.0
    %159 = vmatprep.subr.mxu0 0.0
    %160 = vmatpush1.msra.mxu0 0.0
    %161 = vmatprep.subr.mxu0 0.0
    %162 = vmatpush1.msra.mxu0 0.0
    %163 = vmatprep.subr.mxu0 0.0
    %164 = vmatpush1.msra.mxu0 0.0
    %165 = vmatprep.subr.mxu0 0.0
    %166 = vmatpush1.msra.mxu0 0.0
    %167 = vmatprep.subr.mxu0 0.0
    %168 = vmatpush1.msra.mxu0 0.0
    %169 = vmatprep.subr.mxu0 0.0
    %170 = vmatpush1.msra.mxu0 0.0
    %171 = vmatprep.subr.mxu0 0.0
    %172 = vmatpush1.msra.mxu0 0.0
    %173 = vmatprep.subr.mxu0 0.0
    %174 = vmatpush1.msra.mxu0 0.0
    %175 = vmatprep.subr.mxu0 0.0
    %176 = vmatpush1.msra.mxu0 0.0
    %177 = vmatprep.subr.mxu0 0.0
    %178 = vmatpush1.msra.mxu0 0.0
    %179 = vmatprep.subr.mxu0 0.0
    %180 = vmatpush1.msra.mxu0 0.0
    %181 = vmatprep.subr.mxu0 0.0
    %182 = vmatpush1.msra.mxu0 0.0
    %183 = vmatprep.subr.mxu0 0.0
    %184 = vmatpush1.msra.mxu0 0.0
    %185 = vmatprep.mubr.f32.mxu0 0.0
    %186 = vmatmul.mubr.f32.gmra.mrb[0].mxu0 %v39
    %v187 = vpop.f32.mrb[0].mxu0
    %v188 = vadd.f32 0.0, %v187
    %v189 = vpop.f32.mrb[0].mxu0
    %v190 = vadd.f32 0.0, %v189
    %191 = vmatprep.mubr.f32.mxu0 0.0
    %192 = vmatmul.mubr.f32.gmra.mrb[0].mxu0 %v40
    %v193 = vpop.f32.mrb[0].mxu0
    %v194 = vadd.f32 0.0, %v193
    %v195 = vpop.f32.mrb[0].mxu0
    %v196 = vadd.f32 0.0, %v195
    %197 = vmatprep.mubr.f32.mxu0 0.0
    %198 = vmatmul.mubr.f32.gmra.mrb[0].mxu0 %v41
    %v199 = vpop.f32.mrb[0].mxu0
    %v200 = vadd.f32 0.0, %v199
    %v201 = vpop.f32.mrb[0].mxu0
    %v202 = vadd.f32 0.0, %v201
    %203 = vmatprep.mubr.f32.mxu0 0.0
    %204 = vmatmul.mubr.f32.gmra.mrb[0].mxu0 %v42
    %v205 = vpop.f32.mrb[0].mxu0
    %v206 = vadd.f32 0.0, %v205
    %v207 = vpop.f32.mrb[0].mxu0
    %v208 = vadd.f32 0.0, %v207
    %209 = vdwg.mxu0
    %v210 = vmul.f32 %v83, %v188
    %v211 = vmul.f32 %v86, %v194
    %v212 = vmul.f32 %v83, %v200
    %v213 = vmul.f32 %v86, %v206
    %v215 = vsel %vm56, %v87, 0
    %v218 = vsel %vm56, %v88, 0
    %220 = vmatprep.subr.mxu0 0.0
    %221 = vmatpush1.msra.mxu0 %v190
    %222 = vmatprep.subr.mxu0 0.0
    %223 = vmatpush1.msra.mxu0 %v196
    %224 = vmatprep.subr.mxu0 0.0
    %225 = vmatpush1.msra.mxu0 0.0
    %226 = vmatprep.subr.mxu0 0.0
    %227 = vmatpush1.msra.mxu0 0.0
    %228 = vmatprep.subr.mxu0 0.0
    %229 = vmatpush1.msra.mxu0 0.0
    %230 = vmatprep.subr.mxu0 0.0
    %231 = vmatpush1.msra.mxu0 0.0
    %232 = vmatprep.subr.mxu0 0.0
    %233 = vmatpush1.msra.mxu0 0.0
    %234 = vmatprep.subr.mxu0 0.0
    %235 = vmatpush1.msra.mxu0 0.0
    %236 = vmatprep.subr.mxu0 0.0
    %237 = vmatpush1.msra.mxu0 0.0
    %238 = vmatprep.subr.mxu0 0.0
    %239 = vmatpush1.msra.mxu0 0.0
    %240 = vmatprep.subr.mxu0 0.0
    %241 = vmatpush1.msra.mxu0 0.0
    %242 = vmatprep.subr.mxu0 0.0
    %243 = vmatpush1.msra.mxu0 0.0
    %244 = vmatprep.subr.mxu0 0.0
    %245 = vmatpush1.msra.mxu0 0.0
    %246 = vmatprep.subr.mxu0 0.0
    %247 = vmatpush1.msra.mxu0 0.0
    %248 = vmatprep.subr.mxu0 0.0
    %249 = vmatpush1.msra.mxu0 0.0
    %250 = vmatprep.subr.mxu0 0.0
    %251 = vmatpush1.msra.mxu0 0.0
    %252 = vmatprep.subr.mxu0 0.0
    %253 = vmatpush1.msra.mxu0 0.0
    %254 = vmatprep.subr.mxu0 0.0
    %255 = vmatpush1.msra.mxu0 0.0
    %256 = vmatprep.subr.mxu0 0.0
    %257 = vmatpush1.msra.mxu0 0.0
    %258 = vmatprep.subr.mxu0 0.0
    %259 = vmatpush1.msra.mxu0 0.0
    %260 = vmatprep.subr.mxu0 0.0
    %261 = vmatpush1.msra.mxu0 0.0
    %262 = vmatprep.subr.mxu0 0.0
    %263 = vmatpush1.msra.mxu0 0.0
    %264 = vmatprep.subr.mxu0 0.0
    %265 = vmatpush1.msra.mxu0 0.0
    %266 = vmatprep.subr.mxu0 0.0
    %267 = vmatpush1.msra.mxu0 0.0
    %268 = vmatprep.subr.mxu0 0.0
    %269 = vmatpush1.msra.mxu0 0.0
    %270 = vmatprep.subr.mxu0 0.0
    %271 = vmatpush1.msra.mxu0 0.0
    %272 = vmatprep.subr.mxu0 0.0
    %273 = vmatpush1.msra.mxu0 0.0
    %274 = vmatprep.subr.mxu0 0.0
    %275 = vmatpush1.msra.mxu0 0.0
    %276 = vmatprep.subr.mxu0 0.0
    %277 = vmatpush1.msra.mxu0 0.0
    %278 = vmatprep.subr.mxu0 0.0
    %279 = vmatpush1.msra.mxu0 0.0
    %280 = vmatprep.subr.mxu0 0.0
    %281 = vmatpush1.msra.mxu0 0.0
    %282 = vmatprep.subr.mxu0 0.0
    %283 = vmatpush1.msra.mxu0 0.0
    %284 = vmatprep.mubr.f32.mxu0 0.0
    %285 = vmatmul.mubr.f32.gmra.mrb[0].mxu0 %v215
    %v286 = vpop.f32.mrb[0].mxu0
    %v287 = vadd.f32 0.0, %v286
    %v288 = vpop.f32.mrb[0].mxu0
    %289 = vmatprep.mubr.f32.mxu0 0.0
    %290 = vmatmul.mubr.f32.gmra.mrb[0].mxu0 %v218
    %v291 = vpop.f32.mrb[0].mxu0
    %v292 = vadd.f32 0.0, %v291
    %v293 = vpop.f32.mrb[0].mxu0
    %294 = vdwg.mxu0
    %295 = vmatprep.subr.mxu0 0.0
    %296 = vmatpush1.msra.mxu0 %v202
    %297 = vmatprep.subr.mxu0 0.0
    %298 = vmatpush1.msra.mxu0 %v208
    %299 = vmatprep.subr.mxu0 0.0
    %300 = vmatpush1.msra.mxu0 0.0
    %301 = vmatprep.subr.mxu0 0.0
    %302 = vmatpush1.msra.mxu0 0.0
    %303 = vmatprep.subr.mxu0 0.0
    %304 = vmatpush1.msra.mxu0 0.0
    %305 = vmatprep.subr.mxu0 0.0
    %306 = vmatpush1.msra.mxu0 0.0
    %307 = vmatprep.subr.mxu0 0.0
    %308 = vmatpush1.msra.mxu0 0.0
    %309 = vmatprep.subr.mxu0 0.0
    %310 = vmatpush1.msra.mxu0 0.0
    %311 = vmatprep.subr.mxu0 0.0
    %312 = vmatpush1.msra.mxu0 0.0
    %313 = vmatprep.subr.mxu0 0.0
    %314 = vmatpush1.msra.mxu0 0.0
    %315 = vmatprep.subr.mxu0 0.0
    %316 = vmatpush1.msra.mxu0 0.0
    %317 = vmatprep.subr.mxu0 0.0
    %318 = vmatpush1.msra.mxu0 0.0
    %319 = vmatprep.subr.mxu0 0.0
    %320 = vmatpush1.msra.mxu0 0.0
    %321 = vmatprep.subr.mxu0 0.0
    %322 = vmatpush1.msra.mxu0 0.0
    %323 = vmatprep.subr.mxu0 0.0
    %324 = vmatpush1.msra.mxu0 0.0
    %325 = vmatprep.subr.mxu0 0.0
    %326 = vmatpush1.msra.mxu0 0.0
    %327 = vmatprep.subr.mxu0 0.0
    %328 = vmatpush1.msra.mxu0 0.0
    %329 = vmatprep.subr.mxu0 0.0
    %330 = vmatpush1.msra.mxu0 0.0
    %331 = vmatprep.subr.mxu0 0.0
    %332 = vmatpush1.msra.mxu0 0.0
    %333 = vmatprep.subr.mxu0 0.0
    %334 = vmatpush1.msra.mxu0 0.0
    %335 = vmatprep.subr.mxu0 0.0
    %336 = vmatpush1.msra.mxu0 0.0
    %337 = vmatprep.subr.mxu0 0.0
    %338 = vmatpush1.msra.mxu0 0.0
    %339 = vmatprep.subr.mxu0 0.0
    %340 = vmatpush1.msra.mxu0 0.0
    %341 = vmatprep.subr.mxu0 0.0
    %342 = vmatpush1.msra.mxu0 0.0
    %343 = vmatprep.subr.mxu0 0.0
    %344 = vmatpush1.msra.mxu0 0.0
    %345 = vmatprep.subr.mxu0 0.0
    %346 = vmatpush1.msra.mxu0 0.0
    %347 = vmatprep.subr.mxu0 0.0
    %348 = vmatpush1.msra.mxu0 0.0
    %349 = vmatprep.subr.mxu0 0.0
    %350 = vmatpush1.msra.mxu0 0.0
    %351 = vmatprep.subr.mxu0 0.0
    %352 = vmatpush1.msra.mxu0 0.0
    %353 = vmatprep.subr.mxu0 0.0
    %354 = vmatpush1.msra.mxu0 0.0
    %355 = vmatprep.subr.mxu0 0.0
    %356 = vmatpush1.msra.mxu0 0.0
    %357 = vmatprep.subr.mxu0 0.0
    %358 = vmatpush1.msra.mxu0 0.0
    %359 = vmatprep.mubr.f32.mxu0 0.0
    %360 = vmatmul.mubr.f32.gmra.mrb[0].mxu0 %v215
    %v361 = vpop.f32.mrb[0].mxu0
    %v362 = vadd.f32 0.0, %v361
    %v363 = vpop.f32.mrb[0].mxu0
    %364 = vmatprep.mubr.f32.mxu0 0.0
    %365 = vmatmul.mubr.f32.gmra.mrb[0].mxu0 %v218
    %v366 = vpop.f32.mrb[0].mxu0
    %v367 = vadd.f32 0.0, %v366
    %v368 = vpop.f32.mrb[0].mxu0
    %369 = vdwg.mxu0
    %v370 = vadd.f32 %v210, %v287
    %v371 = vadd.f32 %v211, %v292
    %v372 = vadd.f32 %v212, %v362
    %v373 = vadd.f32 %v213, %v367
    %v374 = vld [vmem:[%s3] sm:$0x1]
    %v376 = vlaneseq
    %v377 = vshrl.u32 %v376, 7
    %v378 = vsub.s32 0, %v377
    %v379 = vrot.slane %v374, %v378
    %v381 = vadd.f32 %v370, %v379
    %v382 = vadd.f32 %v371, %v379
    %v383 = vadd.f32 %v372, %v379
    %v384 = vadd.f32 %v373, %v379
    %v385 = vadd.f32 %v381, %v382
    %v386 = vadd.f32 %v385, %v383
    %v387 = vadd.f32 %v386, %v384
    %v388 = vrot.slane %v387, 4
    %v389 = vadd.f32 %v387, %v388
    %v390 = vrot.slane %v389, 2
    %v391 = vadd.f32 %v389, %v390
    %v392 = vrot.slane %v391, 1
    %v393 = vadd.f32 %v391, %v392
    %v394 = vmul.f32 %v381, %v381
    %v395 = vmul.f32 %v382, %v382
    %v396 = vmul.f32 %v383, %v383
    %v397 = vmul.f32 %v384, %v384
    %v398 = vadd.f32 %v394, %v395
    %v399 = vadd.f32 %v398, %v396
    %v400 = vadd.f32 %v399, %v397
    %v401 = vrot.slane %v400, 4
    %v402 = vadd.f32 %v400, %v401
    %v403 = vrot.slane %v402, 2
    %v404 = vadd.f32 %v402, %v403
    %v405 = vrot.slane %v404, 1
    %v406 = vadd.f32 %v404, %v405
    %v407 = vmul.f32 %v393, 0.03125
    %v408 = vmul.f32 %v406, 0.03125
    %v409 = vmul.f32 %v407, %v407
    %v410 = vsub.f32 %v408, %v409
    %v411 = vsub.f32 %v381, %v407
    %v412 = vsub.f32 %v382, %v407
    %v413 = vsub.f32 %v383, %v407
    %v414 = vsub.f32 %v384, %v407
    %v415 = vadd.f32 %v410, 1e-05
    %v416 = vrsqrt.pop %v415
    %v417 = vmul.f32 %v411, %v416
    %v418 = vmul.f32 %v412, %v416
    %v419 = vmul.f32 %v413, %v416
    %v420 = vmul.f32 %v414, %v416
    %v421 = vld [vmem:[%s4] sm:$0x1]
    %v423 = vlaneseq
    %v424 = vshrl.u32 %v423, 7
    %v425 = vsub.s32 0, %v424
    %v426 = vrot.slane %v421, %v425
    %v428 = vmul.f32 %v417, %v426
    %v429 = vmul.f32 %v418, %v426
    %v430 = vmul.f32 %v419, %v426
    %v431 = vmul.f32 %v420, %v426
    %v432 = vld [vmem:[%s5] sm:$0x1]
    %v434 = vlaneseq
    %v435 = vshrl.u32 %v434, 7
    %v436 = vsub.s32 0, %v435
    %v437 = vrot.slane %v432, %v436
    %v439 = vadd.f32 %v428, %v437
    %v440 = vadd.f32 %v429, %v437
    %v441 = vadd.f32 %v430, %v437
    %v442 = vadd.f32 %v431, %v437
    %vm443 = vcmp.ge.f32.partialorder %v439, 0.0
    %vm444 = vcmp.ge.f32.partialorder %v440, 0.0
    %vm445 = vcmp.ge.f32.partialorder %v441, 0.0
    %vm446 = vcmp.ge.f32.partialorder %v442, 0.0
    %v447 = vmul.f32 %v439, 0.01
    %v448 = vmul.f32 %v440, 0.01
    %v449 = vmul.f32 %v441, 0.01
    %v450 = vmul.f32 %v442, 0.01
    %v451 = vsel %vm443, %v439, %v447
    %v452 = vsel %vm444, %v440, %v448
    %v453 = vsel %vm445, %v441, %v449
    %v454 = vsel %vm446, %v442, %v450
    %v455 = vld [vmem:[%s6] sm:$0xff]
    %v456 = vld [vmem:[%s6 + $0x8] sm:$0xff]
    %v457 = vsel %vm56, %v455, -inf
    %458 = vmax.xlane.f32.xlu0 %v457
    %v459 = vpop.xlane.xlu0 %458
    %v460 = vsel %vm56, %v456, -inf
    %461 = vmax.xlane.f32.xlu0 %v460
    %v462 = vpop.xlane.xlu0 %461
    %v463 = vsub.f32 %v455, %v459
    %v464 = vsub.f32 %v456, %v462
    %v465 = vmul.f32 %v463, 1.442695
    %v466 = vpow.pop %v465
    %v467 = vmul.f32 %v464, 1.442695
    %v468 = vpow.pop %v467
    %v469 = vsel %vm56, %v466, 0.0
    %470 = vadd.xlane.f32.xlu0 %v469
    %v471 = vpop.xlane.xlu0 %470
    %v472 = vsel %vm56, %v468, 0.0
    %473 = vadd.xlane.f32.xlu0 %v472
    %v474 = vpop.xlane.xlu0 %473
    %v475 = vrcp.pop %v471
    %v476 = vmul.f32 %v466, %v475
    %v477 = vrcp.pop %v474
    %v478 = vmul.f32 %v468, %v477
    %v479 = vmul.f32 %v476, %v52
    %v480 = vmul.f32 %v478, %v53
    %v481 = vsel %vm56, %v479, 0.0
    %482 = vadd.xlane.f32.xlu0 %v481
    %v483 = vpop.xlane.xlu0 %482
    %v484 = vsel %vm56, %v480, 0.0
    %485 = vadd.xlane.f32.xlu0 %v484
    %v486 = vpop.xlane.xlu0 %485
    %v487 = vsub.f32 %v476, %v479
    %v488 = vsub.f32 %v478, %v480
    %v489 = vld [vmem:[%s7] sm:$0xff]
    %v490 = vld [vmem:[%s7 + $0x8] sm:$0xff]
    %v491 = vld [vmem:[%s7 + $0x10] sm:$0xff]
    %v492 = vld [vmem:[%s7 + $0x18] sm:$0xff]
    %v493 = vld [vmem:[%s7 + $0x20] sm:$0xff]
    %v494 = vld [vmem:[%s7 + $0x28] sm:$0xff]
    %v495 = vld [vmem:[%s7 + $0x30] sm:$0xff]
    %v496 = vld [vmem:[%s7 + $0x38] sm:$0xff]
    %v497 = vld [vmem:[%s7 + $0x40] sm:$0xff]
    %v498 = vld [vmem:[%s7 + $0x48] sm:$0xff]
    %v499 = vld [vmem:[%s7 + $0x50] sm:$0xff]
    %v500 = vld [vmem:[%s7 + $0x58] sm:$0xff]
    %v501 = vld [vmem:[%s7 + $0x60] sm:$0xff]
    %v502 = vld [vmem:[%s7 + $0x68] sm:$0xff]
    %v503 = vld [vmem:[%s7 + $0x70] sm:$0xff]
    %v504 = vld [vmem:[%s7 + $0x78] sm:$0xff]
    %v505 = vld [vmem:[%s7 + $0x80] sm:$0xff]
    %v506 = vld [vmem:[%s7 + $0x88] sm:$0xff]
    %v507 = vld [vmem:[%s7 + $0x90] sm:$0xff]
    %v508 = vld [vmem:[%s7 + $0x98] sm:$0xff]
    %v509 = vld [vmem:[%s7 + $0xa0] sm:$0xff]
    %v510 = vld [vmem:[%s7 + $0xa8] sm:$0xff]
    %v511 = vld [vmem:[%s7 + $0xb0] sm:$0xff]
    %v512 = vld [vmem:[%s7 + $0xb8] sm:$0xff]
    %v513 = vld [vmem:[%s7 + $0xc0] sm:$0xff]
    %v514 = vld [vmem:[%s7 + $0xc8] sm:$0xff]
    %v515 = vld [vmem:[%s7 + $0xd0] sm:$0xff]
    %v516 = vld [vmem:[%s7 + $0xd8] sm:$0xff]
    %v517 = vld [vmem:[%s7 + $0xe0] sm:$0xff]
    %v518 = vld [vmem:[%s7 + $0xe8] sm:$0xff]
    %v519 = vld [vmem:[%s7 + $0xf0] sm:$0xff]
    %v520 = vld [vmem:[%s7 + $0xf8] sm:$0xff]
    %521 = vmatprep.subr.mxu0 %v490
    %522 = vmatpush1.msra.mxu0 %v489
    %523 = vmatprep.subr.mxu0 %v492
    %524 = vmatpush1.msra.mxu0 %v491
    %525 = vmatprep.subr.mxu0 %v494
    %526 = vmatpush1.msra.mxu0 %v493
    %527 = vmatprep.subr.mxu0 %v496
    %528 = vmatpush1.msra.mxu0 %v495
    %529 = vmatprep.subr.mxu0 %v498
    %530 = vmatpush1.msra.mxu0 %v497
    %531 = vmatprep.subr.mxu0 %v500
    %532 = vmatpush1.msra.mxu0 %v499
    %533 = vmatprep.subr.mxu0 %v502
    %534 = vmatpush1.msra.mxu0 %v501
    %535 = vmatprep.subr.mxu0 %v504
    %536 = vmatpush1.msra.mxu0 %v503
    %537 = vmatprep.subr.mxu0 %v506
    %538 = vmatpush1.msra.mxu0 %v505
    %539 = vmatprep.subr.mxu0 %v508
    %540 = vmatpush1.msra.mxu0 %v507
    %541 = vmatprep.subr.mxu0 %v510
    %542 = vmatpush1.msra.mxu0 %v509
    %543 = vmatprep.subr.mxu0 %v512
    %544 = vmatpush1.msra.mxu0 %v511
    %545 = vmatprep.subr.mxu0 %v514
    %546 = vmatpush1.msra.mxu0 %v513
    %547 = vmatprep.subr.mxu0 %v516
    %548 = vmatpush1.msra.mxu0 %v515
    %549 = vmatprep.subr.mxu0 %v518
    %550 = vmatpush1.msra.mxu0 %v517
    %551 = vmatprep.subr.mxu0 %v520
    %552 = vmatpush1.msra.mxu0 %v519
    %553 = vmatprep.subr.mxu0 0.0
    %554 = vmatpush1.msra.mxu0 0.0
    %555 = vmatprep.subr.mxu0 0.0
    %556 = vmatpush1.msra.mxu0 0.0
    %557 = vmatprep.subr.mxu0 0.0
    %558 = vmatpush1.msra.mxu0 0.0
    %559 = vmatprep.subr.mxu0 0.0
    %560 = vmatpush1.msra.mxu0 0.0
    %561 = vmatprep.subr.mxu0 0.0
    %562 = vmatpush1.msra.mxu0 0.0
    %563 = vmatprep.subr.mxu0 0.0
    %564 = vmatpush1.msra.mxu0 0.0
    %565 = vmatprep.subr.mxu0 0.0
    %566 = vmatpush1.msra.mxu0 0.0
    %567 = vmatprep.subr.mxu0 0.0
    %568 = vmatpush1.msra.mxu0 0.0
    %569 = vmatprep.subr.mxu0 0.0
    %570 = vmatpush1.msra.mxu0 0.0
    %571 = vmatprep.subr.mxu0 0.0
    %572 = vmatpush1.msra.mxu0 0.0
    %573 = vmatprep.subr.mxu0 0.0
    %574 = vmatpush1.msra.mxu0 0.0
    %575 = vmatprep.subr.mxu0 0.0
    %576 = vmatpush1.msra.mxu0 0.0
    %577 = vmatprep.subr.mxu0 0.0
    %578 = vmatpush1.msra.mxu0 0.0
    %579 = vmatprep.subr.mxu0 0.0
    %580 = vmatpush1.msra.mxu0 0.0
    %581 = vmatprep.subr.mxu0 0.0
    %582 = vmatpush1.msra.mxu0 0.0
    %583 = vmatprep.subr.mxu0 0.0
    %584 = vmatpush1.msra.mxu0 0.0
    %585 = vmatprep.mubr.f32.mxu0 0.0
    %586 = vmatmul.mubr.f32.gmra.mrb[0].mxu0 %v451
    %v587 = vpop.f32.mrb[0].mxu0
    %v588 = vadd.f32 0.0, %v587
    %v589 = vpop.f32.mrb[0].mxu0
    %v590 = vadd.f32 0.0, %v589
    %591 = vmatprep.mubr.f32.mxu0 0.0
    %592 = vmatmul.mubr.f32.gmra.mrb[0].mxu0 %v452
    %v593 = vpop.f32.mrb[0].mxu0
    %v594 = vadd.f32 0.0, %v593
    %v595 = vpop.f32.mrb[0].mxu0
    %v596 = vadd.f32 0.0, %v595
    %597 = vmatprep.mubr.f32.mxu0 0.0
    %598 = vmatmul.mubr.f32.gmra.mrb[0].mxu0 %v453
    %v599 = vpop.f32.mrb[0].mxu0
    %v600 = vadd.f32 0.0, %v599
    %v601 = vpop.f32.mrb[0].mxu0
    %v602 = vadd.f32 0.0, %v601
    %603 = vmatprep.mubr.f32.mxu0 0.0
    %604 = vmatmul.mubr.f32.gmra.mrb[0].mxu0 %v454
    %v605 = vpop.f32.mrb[0].mxu0
    %v606 = vadd.f32 0.0, %v605
    %v607 = vpop.f32.mrb[0].mxu0
    %v608 = vadd.f32 0.0, %v607
    %609 = vdwg.mxu0
    %v610 = vmul.f32 %v483, %v588
    %v611 = vmul.f32 %v486, %v594
    %v612 = vmul.f32 %v483, %v600
    %v613 = vmul.f32 %v486, %v606
    %v615 = vsel %vm56, %v487, 0
    %v618 = vsel %vm56, %v488, 0
    %620 = vmatprep.subr.mxu0 0.0
    %621 = vmatpush1.msra.mxu0 %v590
    %622 = vmatprep.subr.mxu0 0.0
    %623 = vmatpush1.msra.mxu0 %v596
    %624 = vmatprep.subr.mxu0 0.0
    %625 = vmatpush1.msra.mxu0 0.0
    %626 = vmatprep.subr.mxu0 0.0
    %627 = vmatpush1.msra.mxu0 0.0
    %628 = vmatprep.subr.mxu0 0.0
    %629 = vmatpush1.msra.mxu0 0.0
    %630 = vmatprep.subr.mxu0 0.0
    %631 = vmatpush1.msra.mxu0 0.0
    %632 = vmatprep.subr.mxu0 0.0
    %633 = vmatpush1.msra.mxu0 0.0
    %634 = vmatprep.subr.mxu0 0.0
    %635 = vmatpush1.msra.mxu0 0.0
    %636 = vmatprep.subr.mxu0 0.0
    %637 = vmatpush1.msra.mxu0 0.0
    %638 = vmatprep.subr.mxu0 0.0
    %639 = vmatpush1.msra.mxu0 0.0
    %640 = vmatprep.subr.mxu0 0.0
    %641 = vmatpush1.msra.mxu0 0.0
    %642 = vmatprep.subr.mxu0 0.0
    %643 = vmatpush1.msra.mxu0 0.0
    %644 = vmatprep.subr.mxu0 0.0
    %645 = vmatpush1.msra.mxu0 0.0
    %646 = vmatprep.subr.mxu0 0.0
    %647 = vmatpush1.msra.mxu0 0.0
    %648 = vmatprep.subr.mxu0 0.0
    %649 = vmatpush1.msra.mxu0 0.0
    %650 = vmatprep.subr.mxu0 0.0
    %651 = vmatpush1.msra.mxu0 0.0
    %652 = vmatprep.subr.mxu0 0.0
    %653 = vmatpush1.msra.mxu0 0.0
    %654 = vmatprep.subr.mxu0 0.0
    %655 = vmatpush1.msra.mxu0 0.0
    %656 = vmatprep.subr.mxu0 0.0
    %657 = vmatpush1.msra.mxu0 0.0
    %658 = vmatprep.subr.mxu0 0.0
    %659 = vmatpush1.msra.mxu0 0.0
    %660 = vmatprep.subr.mxu0 0.0
    %661 = vmatpush1.msra.mxu0 0.0
    %662 = vmatprep.subr.mxu0 0.0
    %663 = vmatpush1.msra.mxu0 0.0
    %664 = vmatprep.subr.mxu0 0.0
    %665 = vmatpush1.msra.mxu0 0.0
    %666 = vmatprep.subr.mxu0 0.0
    %667 = vmatpush1.msra.mxu0 0.0
    %668 = vmatprep.subr.mxu0 0.0
    %669 = vmatpush1.msra.mxu0 0.0
    %670 = vmatprep.subr.mxu0 0.0
    %671 = vmatpush1.msra.mxu0 0.0
    %672 = vmatprep.subr.mxu0 0.0
    %673 = vmatpush1.msra.mxu0 0.0
    %674 = vmatprep.subr.mxu0 0.0
    %675 = vmatpush1.msra.mxu0 0.0
    %676 = vmatprep.subr.mxu0 0.0
    %677 = vmatpush1.msra.mxu0 0.0
    %678 = vmatprep.subr.mxu0 0.0
    %679 = vmatpush1.msra.mxu0 0.0
    %680 = vmatprep.subr.mxu0 0.0
    %681 = vmatpush1.msra.mxu0 0.0
    %682 = vmatprep.subr.mxu0 0.0
    %683 = vmatpush1.msra.mxu0 0.0
    %684 = vmatprep.mubr.f32.mxu0 0.0
    %685 = vmatmul.mubr.f32.gmra.mrb[0].mxu0 %v615
    %v686 = vpop.f32.mrb[0].mxu0
    %v687 = vadd.f32 0.0, %v686
    %v688 = vpop.f32.mrb[0].mxu0
    %689 = vmatprep.mubr.f32.mxu0 0.0
    %690 = vmatmul.mubr.f32.gmra.mrb[0].mxu0 %v618
    %v691 = vpop.f32.mrb[0].mxu0
    %v692 = vadd.f32 0.0, %v691
    %v693 = vpop.f32.mrb[0].mxu0
    %694 = vdwg.mxu0
    %695 = vmatprep.subr.mxu0 0.0
    %696 = vmatpush1.msra.mxu0 %v602
    %697 = vmatprep.subr.mxu0 0.0
    %698 = vmatpush1.msra.mxu0 %v608
    %699 = vmatprep.subr.mxu0 0.0
    %700 = vmatpush1.msra.mxu0 0.0
    %701 = vmatprep.subr.mxu0 0.0
    %702 = vmatpush1.msra.mxu0 0.0
    %703 = vmatprep.subr.mxu0 0.0
    %704 = vmatpush1.msra.mxu0 0.0
    %705 = vmatprep.subr.mxu0 0.0
    %706 = vmatpush1.msra.mxu0 0.0
    %707 = vmatprep.subr.mxu0 0.0
    %708 = vmatpush1.msra.mxu0 0.0
    %709 = vmatprep.subr.mxu0 0.0
    %710 = vmatpush1.msra.mxu0 0.0
    %711 = vmatprep.subr.mxu0 0.0
    %712 = vmatpush1.msra.mxu0 0.0
    %713 = vmatprep.subr.mxu0 0.0
    %714 = vmatpush1.msra.mxu0 0.0
    %715 = vmatprep.subr.mxu0 0.0
    %716 = vmatpush1.msra.mxu0 0.0
    %717 = vmatprep.subr.mxu0 0.0
    %718 = vmatpush1.msra.mxu0 0.0
    %719 = vmatprep.subr.mxu0 0.0
    %720 = vmatpush1.msra.mxu0 0.0
    %721 = vmatprep.subr.mxu0 0.0
    %722 = vmatpush1.msra.mxu0 0.0
    %723 = vmatprep.subr.mxu0 0.0
    %724 = vmatpush1.msra.mxu0 0.0
    %725 = vmatprep.subr.mxu0 0.0
    %726 = vmatpush1.msra.mxu0 0.0
    %727 = vmatprep.subr.mxu0 0.0
    %728 = vmatpush1.msra.mxu0 0.0
    %729 = vmatprep.subr.mxu0 0.0
    %730 = vmatpush1.msra.mxu0 0.0
    %731 = vmatprep.subr.mxu0 0.0
    %732 = vmatpush1.msra.mxu0 0.0
    %733 = vmatprep.subr.mxu0 0.0
    %734 = vmatpush1.msra.mxu0 0.0
    %735 = vmatprep.subr.mxu0 0.0
    %736 = vmatpush1.msra.mxu0 0.0
    %737 = vmatprep.subr.mxu0 0.0
    %738 = vmatpush1.msra.mxu0 0.0
    %739 = vmatprep.subr.mxu0 0.0
    %740 = vmatpush1.msra.mxu0 0.0
    %741 = vmatprep.subr.mxu0 0.0
    %742 = vmatpush1.msra.mxu0 0.0
    %743 = vmatprep.subr.mxu0 0.0
    %744 = vmatpush1.msra.mxu0 0.0
    %745 = vmatprep.subr.mxu0 0.0
    %746 = vmatpush1.msra.mxu0 0.0
    %747 = vmatprep.subr.mxu0 0.0
    %748 = vmatpush1.msra.mxu0 0.0
    %749 = vmatprep.subr.mxu0 0.0
    %750 = vmatpush1.msra.mxu0 0.0
    %751 = vmatprep.subr.mxu0 0.0
    %752 = vmatpush1.msra.mxu0 0.0
    %753 = vmatprep.subr.mxu0 0.0
    %754 = vmatpush1.msra.mxu0 0.0
    %755 = vmatprep.subr.mxu0 0.0
    %756 = vmatpush1.msra.mxu0 0.0
    %757 = vmatprep.subr.mxu0 0.0
    %758 = vmatpush1.msra.mxu0 0.0
    %759 = vmatprep.mubr.f32.mxu0 0.0
    %760 = vmatmul.mubr.f32.gmra.mrb[0].mxu0 %v615
    %v761 = vpop.f32.mrb[0].mxu0
    %v762 = vadd.f32 0.0, %v761
    %v763 = vpop.f32.mrb[0].mxu0
    %764 = vmatprep.mubr.f32.mxu0 0.0
    %765 = vmatmul.mubr.f32.gmra.mrb[0].mxu0 %v618
    %v766 = vpop.f32.mrb[0].mxu0
    %v767 = vadd.f32 0.0, %v766
    %v768 = vpop.f32.mrb[0].mxu0
    %769 = vdwg.mxu0
    %v770 = vadd.f32 %v610, %v687
    %v771 = vadd.f32 %v611, %v692
    %v772 = vadd.f32 %v612, %v762
    %v773 = vadd.f32 %v613, %v767
    %v774 = vld [vmem:[%s8] sm:$0x1]
    %v776 = vlaneseq
    %v777 = vshrl.u32 %v776, 7
    %v778 = vsub.s32 0, %v777
    %v779 = vrot.slane %v774, %v778
    %v781 = vadd.f32 %v770, %v779
    %v782 = vadd.f32 %v771, %v779
    %v783 = vadd.f32 %v772, %v779
    %v784 = vadd.f32 %v773, %v779
    %v785 = vadd.f32 %v781, %v782
    %v786 = vadd.f32 %v785, %v783
    %v787 = vadd.f32 %v786, %v784
    %v788 = vrot.slane %v787, 4
    %v789 = vadd.f32 %v787, %v788
    %v790 = vrot.slane %v789, 2
    %v791 = vadd.f32 %v789, %v790
    %v792 = vrot.slane %v791, 1
    %v793 = vadd.f32 %v791, %v792
    %v794 = vmul.f32 %v781, %v781
    %v795 = vmul.f32 %v782, %v782
    %v796 = vmul.f32 %v783, %v783
    %v797 = vmul.f32 %v784, %v784
    %v798 = vadd.f32 %v794, %v795
    %v799 = vadd.f32 %v798, %v796
    %v800 = vadd.f32 %v799, %v797
    %v801 = vrot.slane %v800, 4
    %v802 = vadd.f32 %v800, %v801
    %v803 = vrot.slane %v802, 2
    %v804 = vadd.f32 %v802, %v803
    %v805 = vrot.slane %v804, 1
    %v806 = vadd.f32 %v804, %v805
    %v807 = vmul.f32 %v793, 0.03125
    %v808 = vmul.f32 %v806, 0.03125
    %v809 = vmul.f32 %v807, %v807
    %v810 = vsub.f32 %v808, %v809
    %v811 = vsub.f32 %v781, %v807
    %v812 = vsub.f32 %v782, %v807
    %v813 = vsub.f32 %v783, %v807
    %v814 = vsub.f32 %v784, %v807
    %v815 = vadd.f32 %v810, 1e-05
    %v816 = vrsqrt.pop %v815
    %v817 = vmul.f32 %v811, %v816
    %v818 = vmul.f32 %v812, %v816
    %v819 = vmul.f32 %v813, %v816
    %v820 = vmul.f32 %v814, %v816
    %v821 = vld [vmem:[%s9] sm:$0x1]
    %v823 = vlaneseq
    %v824 = vshrl.u32 %v823, 7
    %v825 = vsub.s32 0, %v824
    %v826 = vrot.slane %v821, %v825
    %v828 = vmul.f32 %v817, %v826
    %v829 = vmul.f32 %v818, %v826
    %v830 = vmul.f32 %v819, %v826
    %v831 = vmul.f32 %v820, %v826
    %v832 = vld [vmem:[%s10] sm:$0x1]
    %v834 = vlaneseq
    %v835 = vshrl.u32 %v834, 7
    %v836 = vsub.s32 0, %v835
    %v837 = vrot.slane %v832, %v836
    %v839 = vadd.f32 %v828, %v837
    %v840 = vadd.f32 %v829, %v837
    %v841 = vadd.f32 %v830, %v837
    %v842 = vadd.f32 %v831, %v837
    %v843 = vadd.f32 %v839, %v39
    %v844 = vadd.f32 %v840, %v40
    %v845 = vadd.f32 %v841, %v41
    %v846 = vadd.f32 %v842, %v42
    %vm847 = vcmp.ge.f32.partialorder %v843, 0.0
    %vm848 = vcmp.ge.f32.partialorder %v844, 0.0
    %vm849 = vcmp.ge.f32.partialorder %v845, 0.0
    %vm850 = vcmp.ge.f32.partialorder %v846, 0.0
    %v851 = vmul.f32 %v843, 0.01
    %v852 = vmul.f32 %v844, 0.01
    %v853 = vmul.f32 %v845, 0.01
    %v854 = vmul.f32 %v846, 0.01
    %v855 = vsel %vm847, %v843, %v851
    %v856 = vsel %vm848, %v844, %v852
    %v857 = vsel %vm849, %v845, %v853
    %v858 = vsel %vm850, %v846, %v854
    %859 = vst [vmem:[#allocation2] sm:$0xff] %v855
    %860 = vst [vmem:[#allocation2 + $0x8] sm:$0xff] %v856
    %861 = vst [vmem:[#allocation2 + $0x10] sm:$0xff] %v857
    %862 = vst [vmem:[#allocation2 + $0x18] sm:$0xff] %v858
    // Predicated region
    $region46: #{res_semantic_gcn_block.1} parent=1 // pred_check
      _
    $region47: #{res_semantic_gcn_block.1} parent=1 // pred_check_branch
      %864 = sbr.rel (0) target = $region49
    $region48: #{res_semantic_gcn_block.1} parent=1 // pred_region
      %s866 = ssub.s32 512, 512
      %867 = vsyncadd [#allocation3], %s866
      %s868 = sshll.u32 [#allocation2], 4
      %s869 = int_to_ptr.vmem [resolvable:$true] %s868
      %874 = dma.vmem_to_hbm [thread:$0]  %s869, 512, %s11, [#allocation3], 128, 128, 8
    $region49: #{res_semantic_gcn_block.1} parent=1 // pred_fallthru
      _
    // Predicated region
    $region50: #{res_semantic_gcn_block.1} parent=1 // pred_check
      _
    $region51: #{res_semantic_gcn_block.1} parent=1 // pred_check_branch
      %876 = sbr.rel (0) target = $region53
    $region52: #{res_semantic_gcn_block.1} parent=1 // pred_region
      %877 = dma.done [#allocation3], 512
    $region53: #{res_semantic_gcn_block.1} parent=1 // pred_fallthru
      _
    %878 = vsyncpa [#allocation3], 1

</llo_original>
